<compile_context>
chip_gen: v5e
topology: v5e:2x2
jax: 0.10.0
libtpu: 0.0.40
codegen_flags: <defaults>
</compile_context>

<pallas_src>
import jax
import jax.numpy as jnp
from jax.experimental import pallas as pl
from jax.experimental.pallas import tpu as pltpu


# ---------------------------------------------------------------------------
# Kernel
# ---------------------------------------------------------------------------
def mlp_kernel(w1_ref, b1_ref, w2_ref, b2_ref, x_ref, o_ref):
    # SMEM: w1_ref (4,4), b1_ref (4,), w2_ref (2,4), b2_ref (2,)
    # VMEM: x_ref (4, rows, 128)  [feature, packed-batch-rows, lanes]
    #       o_ref (2, rows, 128)
    xs = [x_ref[k] for k in range(4)]            # four fully packed (rows,128) slabs

    # Layer 1 + ReLU:  h[j] = relu(b1[j] + sum_k w1[j,k] * x[k])
    hs = []
    for j in range(4):
        acc = w1_ref[j, 0] * xs[0] + b1_ref[j]   # bias folded into the init
        for k in range(1, 4):
            acc = acc + w1_ref[j, k] * xs[k]
        hs.append(jnp.maximum(acc, 0.0))

    # Layer 2:  y[j] = b2[j] + sum_k w2[j,k] * h[k]
    for j in range(2):
        acc = w2_ref[j, 0] * hs[0] + b2_ref[j]
        for k in range(1, 4):
            acc = acc + w2_ref[j, k] * hs[k]
        o_ref[j] = acc.astype(o_ref.dtype)       # lane-dense (rows,128) store


# ---------------------------------------------------------------------------
# Tiling helpers
# ---------------------------------------------------------------------------
def _round_up(a: int, m: int) -> int:
    return (a + m - 1) // m * m


def _pick_block_rows(nb: int, target_rows: int) -> int:
    """Rows (of 128 batch elements each) per grid step."""
    if nb <= 8:
        return nb                                  # single full-extent block (legal)
    # >=2 grid steps so v7x's two TensorCores both get work via "parallel";
    # otherwise use the big target tile.  Result is a multiple of 8 unless it
    # equals the full extent -- both are legal block shapes.
    rows = min(target_rows, _round_up(pl.cdiv(nb, 2), 8))
    return min(rows, nb)


# ---------------------------------------------------------------------------
# Zero-layout-overhead entry point: feature-major, batch packed as (nb, 128)
# ---------------------------------------------------------------------------
def neural_network_forward_packed(x3, w1, b1, w2, b2, *, tb=128 * 1024):
    """x3: (4, nb, 128) f32 -> (2, nb, 128) f32.  tb = batch elements / tile."""
    assert x3.ndim == 3 and x3.shape[0] == 4 and x3.shape[2] == 128
    assert tb % 1024 == 0 and tb >= 1024

    nb = x3.shape[1]
    rows = _pick_block_rows(nb, tb // 128)
    grid = (pl.cdiv(nb, rows),)                   # ragged last block handled by Pallas

    # Double-buffered x + out tiles; give the compiler headroom but stay well
    # under v7x's 64 MiB physical VMEM per TensorCore.
    tile_bytes = (4 + 2) * rows * 128 * 4
    vmem_limit = int(min(48 * 2**20, max(32 * 2**20, 3 * tile_bytes)))

    return pl.pallas_call(
        mlp_kernel,
        out_shape=jax.ShapeDtypeStruct((2, nb, 128), x3.dtype),
        grid=grid,
        in_specs=[
            # Tiny weights/biases live in SMEM and are read as scalars (VPU FMAs).
            pl.BlockSpec(memory_space=pltpu.MemorySpace.SMEM),   # w1 (4,4)
            pl.BlockSpec(memory_space=pltpu.MemorySpace.SMEM),   # b1 (4,)
            pl.BlockSpec(memory_space=pltpu.MemorySpace.SMEM),   # w2 (2,4)
            pl.BlockSpec(memory_space=pltpu.MemorySpace.SMEM),   # b2 (2,)
            pl.BlockSpec((4, rows, 128), lambda i: (0, i, 0)),   # x tile
        ],
        out_specs=pl.BlockSpec((2, rows, 128), lambda i: (0, i, 0)),
        compiler_params=pltpu.CompilerParams(
            dimension_semantics=("parallel",),    # megacore-shard the batch grid
            vmem_limit_bytes=vmem_limit,
        ),
    )(w1, b1, w2, b2, x3)


# ---------------------------------------------------------------------------
# PyTorch-layout wrapper: x (B, 4) -> (B, 2)
# ---------------------------------------------------------------------------
def neural_network_forward(x, w1, b1, w2, b2, *, tb=128 * 1024):
    """x: (B, 4) f32, w1: (4,4), b1: (4,), w2: (2,4), b2: (2,) -> (B, 2) f32."""
    assert x.ndim == 2 and x.shape[1] == 4
    B = x.shape[0]
    nb = pl.cdiv(B, 128)
    Bp = nb * 128

    # Layout plumbing (one fused XLA copy): batch -> 128-lane-packed rows.
    # In a real pipeline keep activations feature-major end-to-end and call
    # neural_network_forward_packed directly to avoid this HBM round trip.
    xT = x.T                                      # (4, B)
    if Bp != B:
        xT = jnp.pad(xT, ((0, 0), (0, Bp - B)))   # pad only to the next 128
    x3 = xT.reshape(4, nb, 128)

    out3 = neural_network_forward_packed(x3, w1, b1, w2, b2, tb=tb)  # (2, nb, 128)
    return out3.reshape(2, Bp)[:, :B].T           # back to (B, 2)


# ---------------------------------------------------------------------------
# Params / reference
# ---------------------------------------------------------------------------
def init_params(key):
    """PyTorch-style default init: uniform(+-1/sqrt(fan_in)), weight (out, in)."""
    k1, k2, k3, k4 = jax.random.split(key, 4)
    bound = 1.0 / jnp.sqrt(4.0)                   # fan_in = 4 for both layers
    w1 = jax.random.uniform(k1, (4, 4), jnp.float32, -bound, bound)
    b1 = jax.random.uniform(k2, (4,), jnp.float32, -bound, bound)
    w2 = jax.random.uniform(k3, (2, 4), jnp.float32, -bound, bound)
    b2 = jax.random.uniform(k4, (2,), jnp.float32, -bound, bound)
    return w1, b1, w2, b2


def _reference(x, w1, b1, w2, b2):
    # Same math as the PyTorch module (nn.Linear: y = x @ W.T + b).
    return jnp.maximum(x @ w1.T + b1, 0.0) @ w2.T + b2


# ---------------------------------------------------------------------------
# Demo / correctness check
# ---------------------------------------------------------------------------
if __name__ == "__main__":
    key = jax.random.PRNGKey(0)
    k_p, k_x1, k_x2, k_x3 = jax.random.split(key, 4)
    w1, b1, w2, b2 = init_params(k_p)

    fwd = jax.jit(neural_network_forward)

    # Small batch (typical module usage): single block, masked nothing.
    x_small = jax.random.normal(k_x1, (8, 4), jnp.float32)
    out_small = jax.block_until_ready(fwd(x_small, w1, b1, w2, b2))
    assert out_small.shape == (8, 2)
    assert jnp.allclose(out_small, _reference(x_small, w1, b1, w2, b2),
                        atol=1e-5, rtol=1e-5)

    # Non-multiple-of-128 batch: exercises the 128-pad path, a 2-step grid and
    # Pallas's ragged last block.
    x_big = jax.random.normal(k_x2, (2500, 4), jnp.float32)
    out_big = jax.block_until_ready(fwd(x_big, w1, b1, w2, b2))
    assert out_big.shape == (2500, 2)
    assert jnp.allclose(out_big, _reference(x_big, w1, b1, w2, b2),
                        atol=1e-5, rtol=1e-5)

    # Zero-layout-overhead packed feature-major path: (4, nb, 128) -> (2, nb, 128).
    x_packed = jax.random.normal(k_x3, (4, 16, 128), jnp.float32)
    out_packed = jax.block_until_ready(
        jax.jit(neural_network_forward_packed)(x_packed, w1, b1, w2, b2))
    ref_packed = _reference(x_packed.reshape(4, -1).T, w1, b1, w2, b2).T.reshape(2, 16, 128)
    assert jnp.allclose(out_packed, ref_packed, atol=1e-5, rtol=1e-5)

    print("KERNEL_OK")
</pallas_src>

<mosaic_0001>
module attributes {stable_mosaic.version = 11 : i64} {
  func.func @mlp_kernel(%arg0: i32, %arg1: memref<4x4xf32, #tpu.memory_space<smem>>, %arg2: memref<4xf32, #tpu.memory_space<smem>>, %arg3: memref<2x4xf32, #tpu.memory_space<smem>>, %arg4: memref<2xf32, #tpu.memory_space<smem>>, %arg5: memref<4x1x128xf32, #tpu.memory_space<vmem>>, %arg6: memref<2x1x128xf32, #tpu.memory_space<vmem>>) attributes {dimension_semantics = [#tpu.dimension_semantics<parallel>], iteration_bounds = array<i64: 1>, scalar_prefetch = 0 : i64, scratch_operands = 0 : i64, tpu.core_type = #tpu.core_type<tc>, window_params = [{transform_indices = @transform_0, window_bounds = array<i64: 4, 4>}, {transform_indices = @transform_1, window_bounds = array<i64: 4>}, {transform_indices = @transform_2, window_bounds = array<i64: 2, 4>}, {transform_indices = @transform_3, window_bounds = array<i64: 2>}, {transform_indices = @transform_4, window_bounds = array<i64: 4, 1, 128>}, {transform_indices = @transform_5, window_bounds = array<i64: 2, 1, 128>}]} {
    %c0 = arith.constant 0 : index
    %c0_0 = arith.constant 0 : index
    %c0_1 = arith.constant 0 : index
    %0 = vector.load %arg5[%c0, %c0_0, %c0_1] : memref<4x1x128xf32, #tpu.memory_space<vmem>>, vector<1x1x128xf32>
    %1 = vector.shape_cast %0 : vector<1x1x128xf32> to vector<1x128xf32>
    %c1 = arith.constant 1 : index
    %c0_2 = arith.constant 0 : index
    %c0_3 = arith.constant 0 : index
    %2 = vector.load %arg5[%c1, %c0_2, %c0_3] : memref<4x1x128xf32, #tpu.memory_space<vmem>>, vector<1x1x128xf32>
    %3 = vector.shape_cast %2 : vector<1x1x128xf32> to vector<1x128xf32>
    %c2 = arith.constant 2 : index
    %c0_4 = arith.constant 0 : index
    %c0_5 = arith.constant 0 : index
    %4 = vector.load %arg5[%c2, %c0_4, %c0_5] : memref<4x1x128xf32, #tpu.memory_space<vmem>>, vector<1x1x128xf32>
    %5 = vector.shape_cast %4 : vector<1x1x128xf32> to vector<1x128xf32>
    %c3 = arith.constant 3 : index
    %c0_6 = arith.constant 0 : index
    %c0_7 = arith.constant 0 : index
    %6 = vector.load %arg5[%c3, %c0_6, %c0_7] : memref<4x1x128xf32, #tpu.memory_space<vmem>>, vector<1x1x128xf32>
    %7 = vector.shape_cast %6 : vector<1x1x128xf32> to vector<1x128xf32>
    %c0_8 = arith.constant 0 : index
    %c0_9 = arith.constant 0 : index
    %8 = memref.load %arg1[%c0_8, %c0_9] : memref<4x4xf32, #tpu.memory_space<smem>>
    %9 = vector.broadcast %8 : f32 to vector<1x128xf32>
    %10 = arith.mulf %9, %1 : vector<1x128xf32>
    %c0_10 = arith.constant 0 : index
    %11 = memref.load %arg2[%c0_10] : memref<4xf32, #tpu.memory_space<smem>>
    %12 = vector.broadcast %11 : f32 to vector<1x128xf32>
    %13 = arith.addf %10, %12 : vector<1x128xf32>
    %c0_11 = arith.constant 0 : index
    %c1_12 = arith.constant 1 : index
    %14 = memref.load %arg1[%c0_11, %c1_12] : memref<4x4xf32, #tpu.memory_space<smem>>
    %15 = vector.broadcast %14 : f32 to vector<1x128xf32>
    %16 = arith.mulf %15, %3 : vector<1x128xf32>
    %17 = arith.addf %13, %16 : vector<1x128xf32>
    %c0_13 = arith.constant 0 : index
    %c2_14 = arith.constant 2 : index
    %18 = memref.load %arg1[%c0_13, %c2_14] : memref<4x4xf32, #tpu.memory_space<smem>>
    %19 = vector.broadcast %18 : f32 to vector<1x128xf32>
    %20 = arith.mulf %19, %5 : vector<1x128xf32>
    %21 = arith.addf %17, %20 : vector<1x128xf32>
    %c0_15 = arith.constant 0 : index
    %c3_16 = arith.constant 3 : index
    %22 = memref.load %arg1[%c0_15, %c3_16] : memref<4x4xf32, #tpu.memory_space<smem>>
    %23 = vector.broadcast %22 : f32 to vector<1x128xf32>
    %24 = arith.mulf %23, %7 : vector<1x128xf32>
    %25 = arith.addf %21, %24 : vector<1x128xf32>
    %cst = arith.constant 0.000000e+00 : f32
    %26 = vector.broadcast %cst : f32 to vector<1x128xf32>
    %27 = arith.maximumf %25, %26 : vector<1x128xf32>
    %c1_17 = arith.constant 1 : index
    %c0_18 = arith.constant 0 : index
    %28 = memref.load %arg1[%c1_17, %c0_18] : memref<4x4xf32, #tpu.memory_space<smem>>
    %29 = vector.broadcast %28 : f32 to vector<1x128xf32>
    %30 = arith.mulf %29, %1 : vector<1x128xf32>
    %c1_19 = arith.constant 1 : index
    %31 = memref.load %arg2[%c1_19] : memref<4xf32, #tpu.memory_space<smem>>
    %32 = vector.broadcast %31 : f32 to vector<1x128xf32>
    %33 = arith.addf %30, %32 : vector<1x128xf32>
    %c1_20 = arith.constant 1 : index
    %c1_21 = arith.constant 1 : index
    %34 = memref.load %arg1[%c1_20, %c1_21] : memref<4x4xf32, #tpu.memory_space<smem>>
    %35 = vector.broadcast %34 : f32 to vector<1x128xf32>
    %36 = arith.mulf %35, %3 : vector<1x128xf32>
    %37 = arith.addf %33, %36 : vector<1x128xf32>
    %c1_22 = arith.constant 1 : index
    %c2_23 = arith.constant 2 : index
    %38 = memref.load %arg1[%c1_22, %c2_23] : memref<4x4xf32, #tpu.memory_space<smem>>
    %39 = vector.broadcast %38 : f32 to vector<1x128xf32>
    %40 = arith.mulf %39, %5 : vector<1x128xf32>
    %41 = arith.addf %37, %40 : vector<1x128xf32>
    %c1_24 = arith.constant 1 : index
    %c3_25 = arith.constant 3 : index
    %42 = memref.load %arg1[%c1_24, %c3_25] : memref<4x4xf32, #tpu.memory_space<smem>>
    %43 = vector.broadcast %42 : f32 to vector<1x128xf32>
    %44 = arith.mulf %43, %7 : vector<1x128xf32>
    %45 = arith.addf %41, %44 : vector<1x128xf32>
    %cst_26 = arith.constant 0.000000e+00 : f32
    %46 = vector.broadcast %cst_26 : f32 to vector<1x128xf32>
    %47 = arith.maximumf %45, %46 : vector<1x128xf32>
    %c2_27 = arith.constant 2 : index
    %c0_28 = arith.constant 0 : index
    %48 = memref.load %arg1[%c2_27, %c0_28] : memref<4x4xf32, #tpu.memory_space<smem>>
    %49 = vector.broadcast %48 : f32 to vector<1x128xf32>
    %50 = arith.mulf %49, %1 : vector<1x128xf32>
    %c2_29 = arith.constant 2 : index
    %51 = memref.load %arg2[%c2_29] : memref<4xf32, #tpu.memory_space<smem>>
    %52 = vector.broadcast %51 : f32 to vector<1x128xf32>
    %53 = arith.addf %50, %52 : vector<1x128xf32>
    %c2_30 = arith.constant 2 : index
    %c1_31 = arith.constant 1 : index
    %54 = memref.load %arg1[%c2_30, %c1_31] : memref<4x4xf32, #tpu.memory_space<smem>>
    %55 = vector.broadcast %54 : f32 to vector<1x128xf32>
    %56 = arith.mulf %55, %3 : vector<1x128xf32>
    %57 = arith.addf %53, %56 : vector<1x128xf32>
    %c2_32 = arith.constant 2 : index
    %c2_33 = arith.constant 2 : index
    %58 = memref.load %arg1[%c2_32, %c2_33] : memref<4x4xf32, #tpu.memory_space<smem>>
    %59 = vector.broadcast %58 : f32 to vector<1x128xf32>
    %60 = arith.mulf %59, %5 : vector<1x128xf32>
    %61 = arith.addf %57, %60 : vector<1x128xf32>
    %c2_34 = arith.constant 2 : index
    %c3_35 = arith.constant 3 : index
    %62 = memref.load %arg1[%c2_34, %c3_35] : memref<4x4xf32, #tpu.memory_space<smem>>
    %63 = vector.broadcast %62 : f32 to vector<1x128xf32>
    %64 = arith.mulf %63, %7 : vector<1x128xf32>
    %65 = arith.addf %61, %64 : vector<1x128xf32>
    %cst_36 = arith.constant 0.000000e+00 : f32
    %66 = vector.broadcast %cst_36 : f32 to vector<1x128xf32>
    %67 = arith.maximumf %65, %66 : vector<1x128xf32>
    %c3_37 = arith.constant 3 : index
    %c0_38 = arith.constant 0 : index
    %68 = memref.load %arg1[%c3_37, %c0_38] : memref<4x4xf32, #tpu.memory_space<smem>>
    %69 = vector.broadcast %68 : f32 to vector<1x128xf32>
    %70 = arith.mulf %69, %1 : vector<1x128xf32>
    %c3_39 = arith.constant 3 : index
    %71 = memref.load %arg2[%c3_39] : memref<4xf32, #tpu.memory_space<smem>>
    %72 = vector.broadcast %71 : f32 to vector<1x128xf32>
    %73 = arith.addf %70, %72 : vector<1x128xf32>
    %c3_40 = arith.constant 3 : index
    %c1_41 = arith.constant 1 : index
    %74 = memref.load %arg1[%c3_40, %c1_41] : memref<4x4xf32, #tpu.memory_space<smem>>
    %75 = vector.broadcast %74 : f32 to vector<1x128xf32>
    %76 = arith.mulf %75, %3 : vector<1x128xf32>
    %77 = arith.addf %73, %76 : vector<1x128xf32>
    %c3_42 = arith.constant 3 : index
    %c2_43 = arith.constant 2 : index
    %78 = memref.load %arg1[%c3_42, %c2_43] : memref<4x4xf32, #tpu.memory_space<smem>>
    %79 = vector.broadcast %78 : f32 to vector<1x128xf32>
    %80 = arith.mulf %79, %5 : vector<1x128xf32>
    %81 = arith.addf %77, %80 : vector<1x128xf32>
    %c3_44 = arith.constant 3 : index
    %c3_45 = arith.constant 3 : index
    %82 = memref.load %arg1[%c3_44, %c3_45] : memref<4x4xf32, #tpu.memory_space<smem>>
    %83 = vector.broadcast %82 : f32 to vector<1x128xf32>
    %84 = arith.mulf %83, %7 : vector<1x128xf32>
    %85 = arith.addf %81, %84 : vector<1x128xf32>
    %cst_46 = arith.constant 0.000000e+00 : f32
    %86 = vector.broadcast %cst_46 : f32 to vector<1x128xf32>
    %87 = arith.maximumf %85, %86 : vector<1x128xf32>
    %c0_47 = arith.constant 0 : index
    %c0_48 = arith.constant 0 : index
    %88 = memref.load %arg3[%c0_47, %c0_48] : memref<2x4xf32, #tpu.memory_space<smem>>
    %89 = vector.broadcast %88 : f32 to vector<1x128xf32>
    %90 = arith.mulf %89, %27 : vector<1x128xf32>
    %c0_49 = arith.constant 0 : index
    %91 = memref.load %arg4[%c0_49] : memref<2xf32, #tpu.memory_space<smem>>
    %92 = vector.broadcast %91 : f32 to vector<1x128xf32>
    %93 = arith.addf %90, %92 : vector<1x128xf32>
    %c0_50 = arith.constant 0 : index
    %c1_51 = arith.constant 1 : index
    %94 = memref.load %arg3[%c0_50, %c1_51] : memref<2x4xf32, #tpu.memory_space<smem>>
    %95 = vector.broadcast %94 : f32 to vector<1x128xf32>
    %96 = arith.mulf %95, %47 : vector<1x128xf32>
    %97 = arith.addf %93, %96 : vector<1x128xf32>
    %c0_52 = arith.constant 0 : index
    %c2_53 = arith.constant 2 : index
    %98 = memref.load %arg3[%c0_52, %c2_53] : memref<2x4xf32, #tpu.memory_space<smem>>
    %99 = vector.broadcast %98 : f32 to vector<1x128xf32>
    %100 = arith.mulf %99, %67 : vector<1x128xf32>
    %101 = arith.addf %97, %100 : vector<1x128xf32>
    %c0_54 = arith.constant 0 : index
    %c3_55 = arith.constant 3 : index
    %102 = memref.load %arg3[%c0_54, %c3_55] : memref<2x4xf32, #tpu.memory_space<smem>>
    %103 = vector.broadcast %102 : f32 to vector<1x128xf32>
    %104 = arith.mulf %103, %87 : vector<1x128xf32>
    %105 = arith.addf %101, %104 : vector<1x128xf32>
    %c0_56 = arith.constant 0 : index
    %c0_57 = arith.constant 0 : index
    %c0_58 = arith.constant 0 : index
    %106 = vector.load %arg6[%c0_56, %c0_57, %c0_58] : memref<2x1x128xf32, #tpu.memory_space<vmem>>, vector<1x1x128xf32>
    %107 = vector.shape_cast %106 : vector<1x1x128xf32> to vector<1x128xf32>
    %108 = vector.shape_cast %105 : vector<1x128xf32> to vector<1x1x128xf32>
    tpu.vector_store %arg6[%c0_56, %c0_57, %c0_58], %108 {strides = array<i32>} : memref<2x1x128xf32, #tpu.memory_space<vmem>>, vector<1x1x128xf32>,
    %c1_59 = arith.constant 1 : index
    %c0_60 = arith.constant 0 : index
    %109 = memref.load %arg3[%c1_59, %c0_60] : memref<2x4xf32, #tpu.memory_space<smem>>
    %110 = vector.broadcast %109 : f32 to vector<1x128xf32>
    %111 = arith.mulf %110, %27 : vector<1x128xf32>
    %c1_61 = arith.constant 1 : index
    %112 = memref.load %arg4[%c1_61] : memref<2xf32, #tpu.memory_space<smem>>
    %113 = vector.broadcast %112 : f32 to vector<1x128xf32>
    %114 = arith.addf %111, %113 : vector<1x128xf32>
    %c1_62 = arith.constant 1 : index
    %c1_63 = arith.constant 1 : index
    %115 = memref.load %arg3[%c1_62, %c1_63] : memref<2x4xf32, #tpu.memory_space<smem>>
    %116 = vector.broadcast %115 : f32 to vector<1x128xf32>
    %117 = arith.mulf %116, %47 : vector<1x128xf32>
    %118 = arith.addf %114, %117 : vector<1x128xf32>
    %c1_64 = arith.constant 1 : index
    %c2_65 = arith.constant 2 : index
    %119 = memref.load %arg3[%c1_64, %c2_65] : memref<2x4xf32, #tpu.memory_space<smem>>
    %120 = vector.broadcast %119 : f32 to vector<1x128xf32>
    %121 = arith.mulf %120, %67 : vector<1x128xf32>
    %122 = arith.addf %118, %121 : vector<1x128xf32>
    %c1_66 = arith.constant 1 : index
    %c3_67 = arith.constant 3 : index
    %123 = memref.load %arg3[%c1_66, %c3_67] : memref<2x4xf32, #tpu.memory_space<smem>>
    %124 = vector.broadcast %123 : f32 to vector<1x128xf32>
    %125 = arith.mulf %124, %87 : vector<1x128xf32>
    %126 = arith.addf %122, %125 : vector<1x128xf32>
    %c1_68 = arith.constant 1 : index
    %c0_69 = arith.constant 0 : index
    %c0_70 = arith.constant 0 : index
    %127 = vector.load %arg6[%c1_68, %c0_69, %c0_70] : memref<2x1x128xf32, #tpu.memory_space<vmem>>, vector<1x1x128xf32>
    %128 = vector.shape_cast %127 : vector<1x1x128xf32> to vector<1x128xf32>
    %129 = vector.shape_cast %126 : vector<1x128xf32> to vector<1x1x128xf32>
    tpu.vector_store %arg6[%c1_68, %c0_69, %c0_70], %129 {strides = array<i32>} : memref<2x1x128xf32, #tpu.memory_space<vmem>>, vector<1x1x128xf32>,
    return
  }
  func.func @transform_0(%arg0: i32) -> (i32, i32) {
    %c0_i32 = arith.constant 0 : i32
    %c0_i32_0 = arith.constant 0 : i32
    %c0_i32_1 = arith.constant 0 : i32
    return %c0_i32, %c0_i32_0 : i32, i32
  }
  func.func @transform_1(%arg0: i32) -> i32 {
    %c0_i32 = arith.constant 0 : i32
    %c0_i32_0 = arith.constant 0 : i32
    return %c0_i32 : i32
  }
  func.func @transform_2(%arg0: i32) -> (i32, i32) {
    %c0_i32 = arith.constant 0 : i32
    %c0_i32_0 = arith.constant 0 : i32
    %c0_i32_1 = arith.constant 0 : i32
    return %c0_i32, %c0_i32_0 : i32, i32
  }
  func.func @transform_3(%arg0: i32) -> i32 {
    %c0_i32 = arith.constant 0 : i32
    %c0_i32_0 = arith.constant 0 : i32
    return %c0_i32 : i32
  }
  func.func @transform_4(%arg0: i32) -> (i32, i32, i32) {
    %c0_i32 = arith.constant 0 : i32
    %c0_i32_0 = arith.constant 0 : i32
    %c0_i32_1 = arith.constant 0 : i32
    return %c0_i32, %arg0, %c0_i32_0 : i32, i32, i32
  }
  func.func @transform_5(%arg0: i32) -> (i32, i32, i32) {
    %c0_i32 = arith.constant 0 : i32
    %c0_i32_0 = arith.constant 0 : i32
    %c0_i32_1 = arith.constant 0 : i32
    return %c0_i32, %arg0, %c0_i32_0 : i32, i32, i32
  }
}

</mosaic_0001>

<llo_original>
// kernel: neural_network_forward.1
$region0: #{neural_network_forward.1}
  #allocation0 [shape = 'u32[]', space=smem, size = 0x4, offset = 0x4, fixed_abs, tag = 'smem constant byte address 0x4 - core index']
  #allocation1 [shape = 'u32[72,128]{1,0:T(1,128)}', space=vmem, size = 0x9000, scoped, tag = 'internal scratch']
  %s0 = inlined_call_operand.vmem [shape: f32[4,4], index: 0, kind: input, shape index: {}]
  %s1 = inlined_call_operand.vmem [shape: f32[4], index: 1, kind: input, shape index: {}]
  %s2 = inlined_call_operand.vmem [shape: f32[2,4], index: 2, kind: input, shape index: {}]
  %s3 = inlined_call_operand.vmem [shape: f32[2], index: 3, kind: input, shape index: {}]
  %s4 = inlined_call_operand.vmem [shape: f32[4,1,128], index: 4, kind: input, shape index: {}]
  %s5 = inlined_call_operand.vmem [shape: f32[2,1,128], index: 5, kind: output, shape index: {}]
  %s6 = sld [smem:[#allocation0]]
  $region46: #{neural_network_forward.1} parent=0
    _
  %s8 = ssub.s32 1, %s6
  %s9 = scalar_select 0, %s8, %s6
  $region1: #{neural_network_forward.1} parent=0
    #allocation2 [shape = 'u8[2048]{0}', space=smem, size = 0x800, scoped, tag = 'input window, operand 0, single buffered']
    #allocation3 [shape = 's32[1]{0}', space=sflag, size = 0x4, scoped, tag = 'scoped memory for neural_network_forward.1']
    #allocation4 [shape = 'u8[512]{0}', space=smem, size = 0x200, scoped, tag = 'input window, operand 1, single buffered']
    #allocation5 [shape = 's32[1]{0}', space=sflag, size = 0x4, scoped, tag = 'scoped memory for neural_network_forward.1']
    #allocation6 [shape = 'u8[1024]{0}', space=smem, size = 0x400, scoped, tag = 'input window, operand 2, single buffered']
    #allocation7 [shape = 'u8[512]{0}', space=smem, size = 0x200, scoped, tag = 'input window, operand 3, single buffered']
    #allocation8 [shape = 's32[1]{0}', space=sflag, size = 0x4, scoped, tag = 'scoped memory for neural_network_forward.1']
    %10 = vsyncpa [#allocation3], 0
    %11 = vsyncpa [#allocation5], 0
    %12 = vsyncpa [#allocation8], 0
    // Predicated region
    $region2: #{neural_network_forward.1} parent=1 // pred_check
      _
    $region3: #{neural_network_forward.1} parent=1 // pred_check_branch
      %14 = sbr.rel (0) target = $region5
    $region4: #{neural_network_forward.1} parent=1 // pred_region
      %16 = vsyncadd [#allocation3], 0
      %s18 = sshll.u32 %s0, 4
      %s19 = int_to_ptr.vmem [resolvable:$true] %s18
      %21 = dma.vmem_to_smem %s19, 64, [#allocation2], [#allocation3]
    $region5: #{neural_network_forward.1} parent=1 // pred_fallthru
      _
    // Predicated region
    $region6: #{neural_network_forward.1} parent=1 // pred_check
      _
    $region7: #{neural_network_forward.1} parent=1 // pred_check_branch
      %23 = sbr.rel (0) target = $region9
    $region8: #{neural_network_forward.1} parent=1 // pred_region
      %25 = vsyncadd [#allocation5], 0
      %s27 = sshll.u32 %s1, 4
      %s28 = int_to_ptr.vmem [resolvable:$true] %s27
      %30 = dma.vmem_to_smem %s28, 16, [#allocation4], [#allocation5]
    $region9: #{neural_network_forward.1} parent=1 // pred_fallthru
      _
    // Predicated region
    $region10: #{neural_network_forward.1} parent=1 // pred_check
      _
    $region11: #{neural_network_forward.1} parent=1 // pred_check_branch
      %32 = sbr.rel (0) target = $region13
    $region12: #{neural_network_forward.1} parent=1 // pred_region
      %34 = vsyncadd [#allocation5], 0
      %s36 = sshll.u32 %s2, 4
      %s37 = int_to_ptr.vmem [resolvable:$true] %s36
      %39 = dma.vmem_to_smem %s37, 32, [#allocation6], [#allocation5]
    $region13: #{neural_network_forward.1} parent=1 // pred_fallthru
      _
    // Predicated region
    $region14: #{neural_network_forward.1} parent=1 // pred_check
      _
    $region15: #{neural_network_forward.1} parent=1 // pred_check_branch
      %41 = sbr.rel (0) target = $region17
    $region16: #{neural_network_forward.1} parent=1 // pred_region
      %43 = vsyncadd [#allocation8], 0
      %s45 = sshll.u32 %s3, 4
      %s46 = int_to_ptr.vmem [resolvable:$true] %s45
      %48 = dma.vmem_to_smem %s46, 16, [#allocation7], [#allocation8]
    $region17: #{neural_network_forward.1} parent=1 // pred_fallthru
      _
    // Predicated region
    $region18: #{neural_network_forward.1} parent=1 // pred_check
      _
    $region19: #{neural_network_forward.1} parent=1 // pred_check_branch
      %50 = sbr.rel (0) target = $region21
    $region20: #{neural_network_forward.1} parent=1 // pred_region
      _
    $region21: #{neural_network_forward.1} parent=1 // pred_fallthru
      _
    // Predicated region
    $region22: #{neural_network_forward.1} parent=1 // pred_check
      _
    $region23: #{neural_network_forward.1} parent=1 // pred_check_branch
      %52 = sbr.rel (0) target = $region25
    $region24: #{neural_network_forward.1} parent=1 // pred_region
      %54 = dma.done [#allocation3], 64
    $region25: #{neural_network_forward.1} parent=1 // pred_fallthru
      _
    // Predicated region
    $region26: #{neural_network_forward.1} parent=1 // pred_check
      _
    $region27: #{neural_network_forward.1} parent=1 // pred_check_branch
      %56 = sbr.rel (0) target = $region29
    $region28: #{neural_network_forward.1} parent=1 // pred_region
      %58 = dma.done [#allocation5], 16
    $region29: #{neural_network_forward.1} parent=1 // pred_fallthru
      _
    // Predicated region
    $region30: #{neural_network_forward.1} parent=1 // pred_check
      _
    $region31: #{neural_network_forward.1} parent=1 // pred_check_branch
      %60 = sbr.rel (0) target = $region33
    $region32: #{neural_network_forward.1} parent=1 // pred_region
      %62 = dma.done [#allocation5], 32
    $region33: #{neural_network_forward.1} parent=1 // pred_fallthru
      _
    // Predicated region
    $region34: #{neural_network_forward.1} parent=1 // pred_check
      _
    $region35: #{neural_network_forward.1} parent=1 // pred_check_branch
      %64 = sbr.rel (0) target = $region37
    $region36: #{neural_network_forward.1} parent=1 // pred_region
      %66 = dma.done [#allocation8], 16
    $region37: #{neural_network_forward.1} parent=1 // pred_fallthru
      _
    %67 = sfence
    %v68 = vld [vmem:[%s4] sm:$0x1]
    %s69 = scalar_lea.vmem %s4, 1
    %v70 = vld [vmem:[%s69] sm:$0x1]
    %s71 = scalar_lea.vmem %s4, 2
    %v72 = vld [vmem:[%s71] sm:$0x1]
    %s73 = scalar_lea.vmem %s4, 3
    %v74 = vld [vmem:[%s73] sm:$0x1]
    %s75 = sld [smem:[#allocation2]]
    %v76 = vstv %s75
    %v77 = vmul.f32 %v76, %v68
    %s78 = sld [smem:[#allocation4]]
    %v79 = vstv %s78
    %v80 = vadd.f32 %v77, %v79
    %s81 = sld [smem:[#allocation2 + $0x1]]
    %v82 = vstv %s81
    %v83 = vmul.f32 %v82, %v70
    %v84 = vadd.f32 %v80, %v83
    %s85 = sld [smem:[#allocation2 + $0x2]]
    %v86 = vstv %s85
    %v87 = vmul.f32 %v86, %v72
    %v88 = vadd.f32 %v84, %v87
    %s89 = sld [smem:[#allocation2 + $0x3]]
    %v90 = vstv %s89
    %v91 = vmul.f32 %v90, %v74
    %v92 = vadd.f32 %v88, %v91
    %v93 = vmax.f32 %v92, 0.0
    %s94 = sld [smem:[#allocation2 + $0x80]]
    %v95 = vstv %s94
    %v96 = vmul.f32 %v95, %v68
    %s97 = sld [smem:[#allocation4 + $0x1]]
    %v98 = vstv %s97
    %v99 = vadd.f32 %v96, %v98
    %s100 = sld [smem:[#allocation2 + $0x81]]
    %v101 = vstv %s100
    %v102 = vmul.f32 %v101, %v70
    %v103 = vadd.f32 %v99, %v102
    %s104 = sld [smem:[#allocation2 + $0x82]]
    %v105 = vstv %s104
    %v106 = vmul.f32 %v105, %v72
    %v107 = vadd.f32 %v103, %v106
    %s108 = sld [smem:[#allocation2 + $0x83]]
    %v109 = vstv %s108
    %v110 = vmul.f32 %v109, %v74
    %v111 = vadd.f32 %v107, %v110
    %v112 = vmax.f32 %v111, 0.0
    %s113 = sld [smem:[#allocation2 + $0x100]]
    %v114 = vstv %s113
    %v115 = vmul.f32 %v114, %v68
    %s116 = sld [smem:[#allocation4 + $0x2]]
    %v117 = vstv %s116
    %v118 = vadd.f32 %v115, %v117
    %s119 = sld [smem:[#allocation2 + $0x101]]
    %v120 = vstv %s119
    %v121 = vmul.f32 %v120, %v70
    %v122 = vadd.f32 %v118, %v121
    %s123 = sld [smem:[#allocation2 + $0x102]]
    %v124 = vstv %s123
    %v125 = vmul.f32 %v124, %v72
    %v126 = vadd.f32 %v122, %v125
    %s127 = sld [smem:[#allocation2 + $0x103]]
    %v128 = vstv %s127
    %v129 = vmul.f32 %v128, %v74
    %v130 = vadd.f32 %v126, %v129
    %v131 = vmax.f32 %v130, 0.0
    %s132 = sld [smem:[#allocation2 + $0x180]]
    %v133 = vstv %s132
    %v134 = vmul.f32 %v133, %v68
    %s135 = sld [smem:[#allocation4 + $0x3]]
    %v136 = vstv %s135
    %v137 = vadd.f32 %v134, %v136
    %s138 = sld [smem:[#allocation2 + $0x181]]
    %v139 = vstv %s138
    %v140 = vmul.f32 %v139, %v70
    %v141 = vadd.f32 %v137, %v140
    %s142 = sld [smem:[#allocation2 + $0x182]]
    %v143 = vstv %s142
    %v144 = vmul.f32 %v143, %v72
    %v145 = vadd.f32 %v141, %v144
    %s146 = sld [smem:[#allocation2 + $0x183]]
    %v147 = vstv %s146
    %v148 = vmul.f32 %v147, %v74
    %v149 = vadd.f32 %v145, %v148
    %v150 = vmax.f32 %v149, 0.0
    %s151 = sld [smem:[#allocation6]]
    %v152 = vstv %s151
    %v153 = vmul.f32 %v152, %v93
    %s154 = sld [smem:[#allocation7]]
    %v155 = vstv %s154
    %v156 = vadd.f32 %v153, %v155
    %s157 = sld [smem:[#allocation6 + $0x1]]
    %v158 = vstv %s157
    %v159 = vmul.f32 %v158, %v112
    %v160 = vadd.f32 %v156, %v159
    %s161 = sld [smem:[#allocation6 + $0x2]]
    %v162 = vstv %s161
    %v163 = vmul.f32 %v162, %v131
    %v164 = vadd.f32 %v160, %v163
    %s165 = sld [smem:[#allocation6 + $0x3]]
    %v166 = vstv %s165
    %v167 = vmul.f32 %v166, %v150
    %v168 = vadd.f32 %v164, %v167
    %169 = vst [vmem:[%s5] sm:$0x1] %v168
    %s170 = sld [smem:[#allocation6 + $0x80]]
    %v171 = vstv %s170
    %v172 = vmul.f32 %v171, %v93
    %s173 = sld [smem:[#allocation7 + $0x1]]
    %v174 = vstv %s173
    %v175 = vadd.f32 %v172, %v174
    %s176 = sld [smem:[#allocation6 + $0x81]]
    %v177 = vstv %s176
    %v178 = vmul.f32 %v177, %v112
    %v179 = vadd.f32 %v175, %v178
    %s180 = sld [smem:[#allocation6 + $0x82]]
    %v181 = vstv %s180
    %v182 = vmul.f32 %v181, %v131
    %v183 = vadd.f32 %v179, %v182
    %s184 = sld [smem:[#allocation6 + $0x83]]
    %v185 = vstv %s184
    %v186 = vmul.f32 %v185, %v150
    %v187 = vadd.f32 %v183, %v186
    %s188 = scalar_lea.vmem %s5, 1
    %189 = vst [vmem:[%s188] sm:$0x1] %v187
    // Predicated region
    $region38: #{neural_network_forward.1} parent=1 // pred_check
      _
    $region39: #{neural_network_forward.1} parent=1 // pred_check_branch
      %191 = sbr.rel (0) target = $region41
    $region40: #{neural_network_forward.1} parent=1 // pred_region
      _
    $region41: #{neural_network_forward.1} parent=1 // pred_fallthru
      _
    // Predicated region
    $region42: #{neural_network_forward.1} parent=1 // pred_check
      _
    $region43: #{neural_network_forward.1} parent=1 // pred_check_branch
      %193 = sbr.rel (0) target = $region45
    $region44: #{neural_network_forward.1} parent=1 // pred_region
      _
    $region45: #{neural_network_forward.1} parent=1 // pred_fallthru
      _
    %194 = vsyncpa [#allocation3], 1
    %195 = vsyncpa [#allocation5], 1
    %196 = vsyncpa [#allocation8], 1

</llo_original>
